<compile_context>
chip_gen: v7x
topology: tpu7x:2x2x1
jax: 0.10.0
libtpu: 0.0.40
codegen_flags: <defaults>
</compile_context>

<pallas_src>
import functools

import jax
import jax.numpy as jnp
from jax import lax
from jax.experimental import pallas as pl
from jax.experimental.pallas import tpu as pltpu

_LANE = 128


def _round_up(x, m):
    return (x + m - 1) // m * m


def _pad_to(a, shape):
    pads = [(0, t - s) for s, t in zip(a.shape, shape)]
    return jnp.pad(a, pads) if any(p[1] for p in pads) else a


# ------------------------- projection kernel (x @ W) ------------------------

def _proj_kernel(x_ref, w_ref, h_ref):
    # bf16 MXU operands, f32 accumulation.
    x = x_ref[...].astype(jnp.bfloat16)
    w = w_ref[...].astype(jnp.bfloat16)
    h_ref[...] = jnp.dot(x, w, preferred_element_type=jnp.float32)


def _proj_vmem_limit(n_p, f, d):
    ws = 4 * (n_p * f + f * d + n_p * d) + 2 * n_p * (f + d)
    return int(min(max(2 * ws, 8 << 20), 32 << 20))


def _project(x, w):
    n_p, f = x.shape
    d = w.shape[1]
    return pl.pallas_call(
        _proj_kernel,
        out_shape=jax.ShapeDtypeStruct((n_p, d), jnp.float32),
        in_specs=[pl.BlockSpec(memory_space=pltpu.MemorySpace.VMEM)] * 2,
        out_specs=pl.BlockSpec(memory_space=pltpu.MemorySpace.VMEM),
        compiler_params=pltpu.CompilerParams(
            vmem_limit_bytes=_proj_vmem_limit(n_p, f, d)),
    )(x, w)


# ------------------------- row-tiled attention kernel -----------------------

def _gat_attn_kernel(h_ref, adj_ref, al_ref, ar_ref, b_ref, o_ref,
                     *, tile_m, apply_elu):
    row0 = pl.multiple_of(pl.program_id(0) * tile_m, tile_m)

    h = h_ref[...]                                      # [Np, D] f32, resident
    h_tile = h_ref[pl.ds(row0, tile_m), :]              # [T, D]

    # Attention logits e_ij = LeakyReLU(a_l . h_i + a_r . h_j) for this row tile.
    el = jnp.sum(h_tile * al_ref[...], axis=-1, keepdims=True)           # [T, 1]
    # Lane-dense [1, Np] row straight from the MXU (rhs-transposed contraction).
    er = lax.dot_general(ar_ref[...], h, (((1,), (1,)), ((), ())),
                         preferred_element_type=jnp.float32)             # [1, Np]
    e = el + er                                                          # [T, Np]
    e = jnp.where(e > 0, e, 0.2 * e)                                     # LeakyReLU(0.2)

    # Masked softmax over neighbours: mask BEFORE the row max (the fix).
    mask = adj_ref[...] != 0                                             # bf16 0/1 mask
    neg = jnp.float32(-1e30)
    e = jnp.where(mask, e, neg)
    m = jnp.max(e, axis=-1, keepdims=True)                               # masked row max
    p = jnp.exp(e - m)            # masked entries: exp(-1e30 - m) underflows to 0
    denom = jnp.sum(p, axis=-1, keepdims=True)                           # [T, 1]

    # Aggregate un-normalised (bf16 MXU operands), then scale rows: this skips
    # materialising alpha over [T, Np].
    agg = jnp.dot(p.astype(jnp.bfloat16), h.astype(jnp.bfloat16),
                  preferred_element_type=jnp.float32)                    # [T, D]
    out = agg * pl.reciprocal(denom + 1e-9, approx=True) + b_ref[...]
    if apply_elu:
        out = jnp.where(out > 0, out, jnp.exp(out) - 1.0)                # ELU
    o_ref[...] = out


def _attn_vmem_limit(n_p, d, tile_m):
    ws = (4 * n_p * d                 # resident f32 h
          + 2 * 2 * tile_m * n_p      # double-buffered bf16 adj tiles
          + 2 * 4 * tile_m * d        # double-buffered f32 output tiles
          + 4 * 4 * tile_m * n_p      # e / mask / p temporaries
          + 4 * 4 * tile_m * d        # agg / out temporaries
          + 4 * 8 * d)                # params
    return int(min(max(2 * ws, 8 << 20), 32 << 20))


def _gat_attention(h, adj_b, al, ar, b, *, apply_elu, tile_m):
    n_p, d = h.shape
    grid_t = n_p // tile_m
    kernel = functools.partial(_gat_attn_kernel, tile_m=tile_m,
                               apply_elu=apply_elu)
    return pl.pallas_call(
        kernel,
        out_shape=jax.ShapeDtypeStruct((n_p, d), jnp.float32),
        grid=(grid_t,),
        in_specs=[
            pl.BlockSpec((n_p, d), lambda i: (0, 0)),        # h: whole-array, DMA'd once
            pl.BlockSpec((tile_m, n_p), lambda i: (i, 0)),   # adj row tile, pipelined
            pl.BlockSpec((1, d), lambda i: (0, 0)),          # a_l
            pl.BlockSpec((1, d), lambda i: (0, 0)),          # a_r
            pl.BlockSpec((1, d), lambda i: (0, 0)),          # bias
        ],
        out_specs=pl.BlockSpec((tile_m, d), lambda i: (i, 0)),
        compiler_params=pltpu.CompilerParams(
            dimension_semantics=("parallel",),
            vmem_limit_bytes=_attn_vmem_limit(n_p, d, tile_m)),
    )(h, adj_b, al, ar, b)


# ------------------------------- NET.forward --------------------------------

def net_forward(features, adj, params, *, tile_m=128):
    """NET.forward: output = self.net(features)  (inner 2-layer GAT)."""
    n, f = features.shape
    hidden = params["w1"].shape[1]
    num_classes = params["w2"].shape[1]

    n_p = _round_up(n, max(tile_m, _LANE))   # row/col padding of the graph
    dp = _round_up(hidden, _LANE)            # lane-pad hidden dim
    cp = _round_up(num_classes, _LANE)       # lane-pad class dim

    # Zero-padding is transparent: padded weight columns/rows, biases and
    # attention vectors are zero, ELU(0) = 0, and padded adjacency rows/cols
    # are zero so padded nodes are never attended.
    x = _pad_to(features, (n_p, f))
    adj_b = _pad_to(adj, (n_p, n_p)).astype(jnp.bfloat16)   # exact for a 0/1 mask

    w1 = _pad_to(params["w1"], (f, dp))
    al1 = _pad_to(params["al1"], (1, dp))
    ar1 = _pad_to(params["ar1"], (1, dp))
    b1 = _pad_to(params["b1"], (1, dp))
    w2 = _pad_to(params["w2"], (dp, cp))
    al2 = _pad_to(params["al2"], (1, cp))
    ar2 = _pad_to(params["ar2"], (1, cp))
    b2 = _pad_to(params["b2"], (1, cp))

    h1 = _project(x, w1)                                             # [Np, Dp]
    z1 = _gat_attention(h1, adj_b, al1, ar1, b1,
                        apply_elu=True, tile_m=tile_m)               # [Np, Dp]
    h2 = _project(z1, w2)                                            # [Np, Cp]
    logits = _gat_attention(h2, adj_b, al2, ar2, b2,
                            apply_elu=False, tile_m=tile_m)          # [Np, Cp]

    # TODO(synk): the wrapped DGL GAT also returns per-layer attention tensors
    # alongside the logits; only the logits output is reproduced here.
    return logits[:n, :num_classes]


# ---------------- pure-JAX reference (for a correctness check) --------------

def _ref_layer(x, adj, w, al, ar, b, apply_elu):
    h = x @ w
    el = jnp.sum(h * al, axis=-1, keepdims=True)
    er = jnp.sum(h * ar, axis=-1, keepdims=True)
    e = el + er.T
    e = jnp.where(e > 0, e, 0.2 * e)
    e = jnp.where(adj > 0, e, -1e9)
    e = e - jnp.max(e, axis=-1, keepdims=True)
    p = jnp.exp(e) * adj
    alpha = p / (jnp.sum(p, axis=-1, keepdims=True) + 1e-9)
    out = alpha @ h + b
    if apply_elu:
        out = jnp.where(out > 0, out, jnp.exp(out) - 1.0)
    return out


def ref_forward(features, adj, params):
    h = _ref_layer(features, adj, params["w1"], params["al1"], params["ar1"],
                   params["b1"], True)
    return _ref_layer(h, adj, params["w2"], params["al2"], params["ar2"],
                      params["b2"], False)


if __name__ == "__main__":
    # N deliberately not a multiple of 128 so the row padding + 2-tile grid are
    # both exercised.
    N, F_IN, HIDDEN, NUM_CLASSES = 200, 64, 64, 16

    key = jax.random.PRNGKey(0)
    kx, kadj, k1, k2, k3, k4, k5, k6 = jax.random.split(key, 8)

    features = jax.random.normal(kx, (N, F_IN), dtype=jnp.float32)

    # Random sparse-ish adjacency with guaranteed self-loops.
    adj = (jax.random.uniform(kadj, (N, N)) < 0.15).astype(jnp.float32)
    adj = jnp.maximum(adj, jnp.eye(N, dtype=jnp.float32))

    def glorot(k, shape):
        fan_in, fan_out = shape[0], shape[1]
        lim = (6.0 / (fan_in + fan_out)) ** 0.5
        return jax.random.uniform(k, shape, jnp.float32, -lim, lim)

    params = {
        "w1": glorot(k1, (F_IN, HIDDEN)),
        "al1": glorot(k2, (1, HIDDEN)),
        "ar1": glorot(k3, (1, HIDDEN)),
        "b1": jnp.zeros((1, HIDDEN), jnp.float32),
        "w2": glorot(k4, (HIDDEN, NUM_CLASSES)),
        "al2": glorot(k5, (1, NUM_CLASSES)),
        "ar2": glorot(k6, (1, NUM_CLASSES)),
        "b2": jnp.zeros((1, NUM_CLASSES), jnp.float32),
    }

    out = jax.block_until_ready(net_forward(features, adj, params))
    ref = jax.block_until_ready(ref_forward(features, adj, params))

    assert out.shape == (N, NUM_CLASSES)
    # Tolerance accommodates bf16 MXU inputs (f32 accumulation) and the
    # approximate EUP reciprocal; the reference is pure f32.
    assert jnp.allclose(out, ref, atol=5e-2, rtol=5e-2), "mismatch vs reference"
    print("KERNEL_OK")
</pallas_src>

<mosaic_0001>
module attributes {stable_mosaic.version = 11 : i64} {
  func.func @_proj_kernel(%arg0: memref<256x64xf32, #tpu.memory_space<vmem>>, %arg1: memref<64x128xf32, #tpu.memory_space<vmem>>, %arg2: memref<256x128xf32, #tpu.memory_space<vmem>>) attributes {dimension_semantics = [], scalar_prefetch = 0 : i64, scratch_operands = 0 : i64, tpu.core_type = #tpu.core_type<tc>} {
    %c0 = arith.constant 0 : index
    %c0_0 = arith.constant 0 : index
    %0 = vector.load %arg0[%c0, %c0_0] : memref<256x64xf32, #tpu.memory_space<vmem>>, vector<256x64xf32>
    %1 = arith.truncf %0 : vector<256x64xf32> to vector<256x64xbf16>
    %c0_1 = arith.constant 0 : index
    %c0_2 = arith.constant 0 : index
    %2 = vector.load %arg1[%c0_1, %c0_2] : memref<64x128xf32, #tpu.memory_space<vmem>>, vector<64x128xf32>
    %3 = arith.truncf %2 : vector<64x128xf32> to vector<64x128xbf16>
    %cst = arith.constant dense<0.000000e+00> : vector<256x128xf32>
    %4 = tpu.matmul %1, %3, %cst {dimension_numbers = #tpu.dot_dimension_numbers<[1], [0], [0], [1], [0, 0, 1, 1], [], []>} : vector<256x64xbf16>, vector<64x128xbf16>, vector<256x128xf32> -> vector<256x128xf32>
    %c0_3 = arith.constant 0 : index
    %c0_4 = arith.constant 0 : index
    %5 = vector.load %arg2[%c0_3, %c0_4] : memref<256x128xf32, #tpu.memory_space<vmem>>, vector<256x128xf32>
    tpu.vector_store %arg2[%c0_3, %c0_4], %4 {strides = array<i32>} : memref<256x128xf32, #tpu.memory_space<vmem>>, vector<256x128xf32>,
    return
  }
}

</mosaic_0001>

<llo_original>
// kernel: tpu_custom_call.1
$region0: #{tpu_custom_call.1}
  #allocation0 [shape = 'u32[]', space=smem, size = 0x4, offset = 0x4, fixed_abs, tag = 'smem constant byte address 0x4 - core index']
  #allocation1 [shape = 'u32[144,128]{1,0:T(1,128)}', space=vmem, size = 0x12000, scoped, tag = 'internal scratch']
  %s0 = inlined_call_operand.vmem [shape: f32[256,64], index: 0, kind: input, shape index: {}]
  %s1 = inlined_call_operand.vmem [shape: f32[64,128], index: 1, kind: input, shape index: {}]
  %s2 = inlined_call_operand.hbm [shape: f32[256,128], index: 2, kind: output, shape index: {}]
  %s3 = sld [smem:[#allocation0]]
  $region18: #{tpu_custom_call.1} parent=0
    _
  %s5 = ssub.s32 1, %s3
  %s6 = scalar_select 0, %s5, %s3
  $region1: #{tpu_custom_call.1} parent=0
    #allocation2 [shape = 'u8[131072]{0}', space=vmem, size = 0x20000, scoped, tag = 'output window, operand 0, single buffered']
    #allocation3 [shape = 's32[1]{0}', space=sflag, size = 0x4, scoped, tag = 'scoped memory for tpu_custom_call.1']
    %7 = vsyncpa [#allocation3], 0
    // Predicated region
    $region2: #{tpu_custom_call.1} parent=1 // pred_check
      _
    $region3: #{tpu_custom_call.1} parent=1 // pred_check_branch
      %9 = sbr.rel (0) target = $region5
    $region4: #{tpu_custom_call.1} parent=1 // pred_region
      _
    $region5: #{tpu_custom_call.1} parent=1 // pred_fallthru
      _
    // Predicated region
    $region6: #{tpu_custom_call.1} parent=1 // pred_check
      _
    $region7: #{tpu_custom_call.1} parent=1 // pred_check_branch
      %11 = sbr.rel (0) target = $region9
    $region8: #{tpu_custom_call.1} parent=1 // pred_region
      _
    $region9: #{tpu_custom_call.1} parent=1 // pred_fallthru
      _
    %v13 = vld [vmem:[%s0] sm:$0xff]
    %v14 = vld [vmem:[%s0 + $0x8] sm:$0xff]
    %v15 = vld [vmem:[%s0 + $0x10] sm:$0xff]
    %v16 = vld [vmem:[%s0 + $0x18] sm:$0xff]
    %v17 = vld [vmem:[%s0 + $0x20] sm:$0xff]
    %v18 = vld [vmem:[%s0 + $0x28] sm:$0xff]
    %v19 = vld [vmem:[%s0 + $0x30] sm:$0xff]
    %v20 = vld [vmem:[%s0 + $0x38] sm:$0xff]
    %v21 = vld [vmem:[%s0 + $0x40] sm:$0xff]
    %v22 = vld [vmem:[%s0 + $0x48] sm:$0xff]
    %v23 = vld [vmem:[%s0 + $0x50] sm:$0xff]
    %v24 = vld [vmem:[%s0 + $0x58] sm:$0xff]
    %v25 = vld [vmem:[%s0 + $0x60] sm:$0xff]
    %v26 = vld [vmem:[%s0 + $0x68] sm:$0xff]
    %v27 = vld [vmem:[%s0 + $0x70] sm:$0xff]
    %v28 = vld [vmem:[%s0 + $0x78] sm:$0xff]
    %v29 = vld [vmem:[%s0 + $0x80] sm:$0xff]
    %v30 = vld [vmem:[%s0 + $0x88] sm:$0xff]
    %v31 = vld [vmem:[%s0 + $0x90] sm:$0xff]
    %v32 = vld [vmem:[%s0 + $0x98] sm:$0xff]
    %v33 = vld [vmem:[%s0 + $0xa0] sm:$0xff]
    %v34 = vld [vmem:[%s0 + $0xa8] sm:$0xff]
    %v35 = vld [vmem:[%s0 + $0xb0] sm:$0xff]
    %v36 = vld [vmem:[%s0 + $0xb8] sm:$0xff]
    %v37 = vld [vmem:[%s0 + $0xc0] sm:$0xff]
    %v38 = vld [vmem:[%s0 + $0xc8] sm:$0xff]
    %v39 = vld [vmem:[%s0 + $0xd0] sm:$0xff]
    %v40 = vld [vmem:[%s0 + $0xd8] sm:$0xff]
    %v41 = vld [vmem:[%s0 + $0xe0] sm:$0xff]
    %v42 = vld [vmem:[%s0 + $0xe8] sm:$0xff]
    %v43 = vld [vmem:[%s0 + $0xf0] sm:$0xff]
    %v44 = vld [vmem:[%s0 + $0xf8] sm:$0xff]
    %v45 = vpack.c.bf16 %v14, %v13
    %v46 = vpack.c.bf16 %v16, %v15
    %v47 = vpack.c.bf16 %v18, %v17
    %v48 = vpack.c.bf16 %v20, %v19
    %v49 = vpack.c.bf16 %v22, %v21
    %v50 = vpack.c.bf16 %v24, %v23
    %v51 = vpack.c.bf16 %v26, %v25
    %v52 = vpack.c.bf16 %v28, %v27
    %v53 = vpack.c.bf16 %v30, %v29
    %v54 = vpack.c.bf16 %v32, %v31
    %v55 = vpack.c.bf16 %v34, %v33
    %v56 = vpack.c.bf16 %v36, %v35
    %v57 = vpack.c.bf16 %v38, %v37
    %v58 = vpack.c.bf16 %v40, %v39
    %v59 = vpack.c.bf16 %v42, %v41
    %v60 = vpack.c.bf16 %v44, %v43
    %v61 = vld [vmem:[%s1] sm:$0xff]
    %v62 = vld [vmem:[%s1 + $0x8] sm:$0xff]
    %v63 = vld [vmem:[%s1 + $0x10] sm:$0xff]
    %v64 = vld [vmem:[%s1 + $0x18] sm:$0xff]
    %v65 = vld [vmem:[%s1 + $0x20] sm:$0xff]
    %v66 = vld [vmem:[%s1 + $0x28] sm:$0xff]
    %v67 = vld [vmem:[%s1 + $0x30] sm:$0xff]
    %v68 = vld [vmem:[%s1 + $0x38] sm:$0xff]
    %v69 = vpack.c.bf16 %v62, %v61
    %v70 = vpack.c.bf16 %v64, %v63
    %v71 = vpack.c.bf16 %v66, %v65
    %v72 = vpack.c.bf16 %v68, %v67
    %vm73 = vcmask 523264
    %v75 = vsel %vm73, %v45, 0
    %v78 = vsel %vm73, %v46, 0
    %v81 = vsel %vm73, %v47, 0
    %v84 = vsel %vm73, %v48, 0
    %v87 = vsel %vm73, %v49, 0
    %v90 = vsel %vm73, %v50, 0
    %v93 = vsel %vm73, %v51, 0
    %v96 = vsel %vm73, %v52, 0
    %v99 = vsel %vm73, %v53, 0
    %v102 = vsel %vm73, %v54, 0
    %v105 = vsel %vm73, %v55, 0
    %v108 = vsel %vm73, %v56, 0
    %v111 = vsel %vm73, %v57, 0
    %v114 = vsel %vm73, %v58, 0
    %v117 = vsel %vm73, %v59, 0
    %v120 = vsel %vm73, %v60, 0
    %122 = vmatprep.subr.bf16.mxu0 0
    %123 = vmatpush1.bf16.msra.mxu0 %v69
    %124 = vmatprep.subr.bf16.mxu0 0
    %125 = vmatpush1.bf16.msra.mxu0 %v70
    %126 = vmatprep.subr.bf16.mxu0 0
    %127 = vmatpush1.bf16.msra.mxu0 %v71
    %128 = vmatprep.subr.bf16.mxu0 0
    %129 = vmatpush1.bf16.msra.mxu0 %v72
    %130 = vmatprep.subr.bf16.mxu0 0
    %131 = vmatpush1.bf16.msra.mxu0 0
    %132 = vmatprep.subr.bf16.mxu0 0
    %133 = vmatpush1.bf16.msra.mxu0 0
    %134 = vmatprep.subr.bf16.mxu0 0
    %135 = vmatpush1.bf16.msra.mxu0 0
    %136 = vmatprep.subr.bf16.mxu0 0
    %137 = vmatpush1.bf16.msra.mxu0 0
    %138 = vmatprep.subr.bf16.mxu0 0
    %139 = vmatpush1.bf16.msra.mxu0 0
    %140 = vmatprep.subr.bf16.mxu0 0
    %141 = vmatpush1.bf16.msra.mxu0 0
    %142 = vmatprep.subr.bf16.mxu0 0
    %143 = vmatpush1.bf16.msra.mxu0 0
    %144 = vmatprep.subr.bf16.mxu0 0
    %145 = vmatpush1.bf16.msra.mxu0 0
    %146 = vmatprep.subr.bf16.mxu0 0
    %147 = vmatpush1.bf16.msra.mxu0 0
    %148 = vmatprep.subr.bf16.mxu0 0
    %149 = vmatpush1.bf16.msra.mxu0 0
    %150 = vmatprep.subr.bf16.mxu0 0
    %151 = vmatpush1.bf16.msra.mxu0 0
    %152 = vmatprep.subr.bf16.mxu0 0
    %153 = vmatpush1.bf16.msra.mxu0 0
    %154 = vmatprep.mubr.bf16.mxu0 0
    %155 = vmatmul.mubr.bf16.gmra.mrb[0].mxu0 %v75
    %v156 = vpop.f32.mrb[0].mxu0
    %v157 = vadd.f32 0.0, %v156
    %v158 = vpop.f32.mrb[0].mxu0
    %v159 = vpop.f32.mrb[0].mxu0
    %v160 = vadd.f32 0.0, %v159
    %v161 = vpop.f32.mrb[0].mxu0
    %162 = vmatprep.mubr.bf16.mxu0 0
    %163 = vmatmul.mubr.bf16.gmra.mrb[0].mxu0 %v78
    %v164 = vpop.f32.mrb[0].mxu0
    %v165 = vadd.f32 0.0, %v164
    %v166 = vpop.f32.mrb[0].mxu0
    %v167 = vpop.f32.mrb[0].mxu0
    %v168 = vadd.f32 0.0, %v167
    %v169 = vpop.f32.mrb[0].mxu0
    %170 = vmatprep.mubr.bf16.mxu0 0
    %171 = vmatmul.mubr.bf16.gmra.mrb[0].mxu0 %v81
    %v172 = vpop.f32.mrb[0].mxu0
    %v173 = vadd.f32 0.0, %v172
    %v174 = vpop.f32.mrb[0].mxu0
    %v175 = vpop.f32.mrb[0].mxu0
    %v176 = vadd.f32 0.0, %v175
    %v177 = vpop.f32.mrb[0].mxu0
    %178 = vmatprep.mubr.bf16.mxu0 0
    %179 = vmatmul.mubr.bf16.gmra.mrb[0].mxu0 %v84
    %v180 = vpop.f32.mrb[0].mxu0
    %v181 = vadd.f32 0.0, %v180
    %v182 = vpop.f32.mrb[0].mxu0
    %v183 = vpop.f32.mrb[0].mxu0
    %v184 = vadd.f32 0.0, %v183
    %v185 = vpop.f32.mrb[0].mxu0
    %186 = vmatprep.mubr.bf16.mxu0 0
    %187 = vmatmul.mubr.bf16.gmra.mrb[0].mxu0 %v87
    %v188 = vpop.f32.mrb[0].mxu0
    %v189 = vadd.f32 0.0, %v188
    %v190 = vpop.f32.mrb[0].mxu0
    %v191 = vpop.f32.mrb[0].mxu0
    %v192 = vadd.f32 0.0, %v191
    %v193 = vpop.f32.mrb[0].mxu0
    %194 = vmatprep.mubr.bf16.mxu0 0
    %195 = vmatmul.mubr.bf16.gmra.mrb[0].mxu0 %v90
    %v196 = vpop.f32.mrb[0].mxu0
    %v197 = vadd.f32 0.0, %v196
    %v198 = vpop.f32.mrb[0].mxu0
    %v199 = vpop.f32.mrb[0].mxu0
    %v200 = vadd.f32 0.0, %v199
    %v201 = vpop.f32.mrb[0].mxu0
    %202 = vmatprep.mubr.bf16.mxu0 0
    %203 = vmatmul.mubr.bf16.gmra.mrb[0].mxu0 %v93
    %v204 = vpop.f32.mrb[0].mxu0
    %v205 = vadd.f32 0.0, %v204
    %v206 = vpop.f32.mrb[0].mxu0
    %v207 = vpop.f32.mrb[0].mxu0
    %v208 = vadd.f32 0.0, %v207
    %v209 = vpop.f32.mrb[0].mxu0
    %210 = vmatprep.mubr.bf16.mxu0 0
    %211 = vmatmul.mubr.bf16.gmra.mrb[0].mxu0 %v96
    %v212 = vpop.f32.mrb[0].mxu0
    %v213 = vadd.f32 0.0, %v212
    %v214 = vpop.f32.mrb[0].mxu0
    %v215 = vpop.f32.mrb[0].mxu0
    %v216 = vadd.f32 0.0, %v215
    %v217 = vpop.f32.mrb[0].mxu0
    %218 = vmatprep.mubr.bf16.mxu0 0
    %219 = vmatmul.mubr.bf16.gmra.mrb[0].mxu0 %v99
    %v220 = vpop.f32.mrb[0].mxu0
    %v221 = vadd.f32 0.0, %v220
    %v222 = vpop.f32.mrb[0].mxu0
    %v223 = vpop.f32.mrb[0].mxu0
    %v224 = vadd.f32 0.0, %v223
    %v225 = vpop.f32.mrb[0].mxu0
    %226 = vmatprep.mubr.bf16.mxu0 0
    %227 = vmatmul.mubr.bf16.gmra.mrb[0].mxu0 %v102
    %v228 = vpop.f32.mrb[0].mxu0
    %v229 = vadd.f32 0.0, %v228
    %v230 = vpop.f32.mrb[0].mxu0
    %v231 = vpop.f32.mrb[0].mxu0
    %v232 = vadd.f32 0.0, %v231
    %v233 = vpop.f32.mrb[0].mxu0
    %234 = vmatprep.mubr.bf16.mxu0 0
    %235 = vmatmul.mubr.bf16.gmra.mrb[0].mxu0 %v105
    %v236 = vpop.f32.mrb[0].mxu0
    %v237 = vadd.f32 0.0, %v236
    %v238 = vpop.f32.mrb[0].mxu0
    %v239 = vpop.f32.mrb[0].mxu0
    %v240 = vadd.f32 0.0, %v239
    %v241 = vpop.f32.mrb[0].mxu0
    %242 = vmatprep.mubr.bf16.mxu0 0
    %243 = vmatmul.mubr.bf16.gmra.mrb[0].mxu0 %v108
    %v244 = vpop.f32.mrb[0].mxu0
    %v245 = vadd.f32 0.0, %v244
    %v246 = vpop.f32.mrb[0].mxu0
    %v247 = vpop.f32.mrb[0].mxu0
    %v248 = vadd.f32 0.0, %v247
    %v249 = vpop.f32.mrb[0].mxu0
    %250 = vmatprep.mubr.bf16.mxu0 0
    %251 = vmatmul.mubr.bf16.gmra.mrb[0].mxu0 %v111
    %v252 = vpop.f32.mrb[0].mxu0
    %v253 = vadd.f32 0.0, %v252
    %v254 = vpop.f32.mrb[0].mxu0
    %v255 = vpop.f32.mrb[0].mxu0
    %v256 = vadd.f32 0.0, %v255
    %v257 = vpop.f32.mrb[0].mxu0
    %258 = vmatprep.mubr.bf16.mxu0 0
    %259 = vmatmul.mubr.bf16.gmra.mrb[0].mxu0 %v114
    %v260 = vpop.f32.mrb[0].mxu0
    %v261 = vadd.f32 0.0, %v260
    %v262 = vpop.f32.mrb[0].mxu0
    %v263 = vpop.f32.mrb[0].mxu0
    %v264 = vadd.f32 0.0, %v263
    %v265 = vpop.f32.mrb[0].mxu0
    %266 = vmatprep.mubr.bf16.mxu0 0
    %267 = vmatmul.mubr.bf16.gmra.mrb[0].mxu0 %v117
    %v268 = vpop.f32.mrb[0].mxu0
    %v269 = vadd.f32 0.0, %v268
    %v270 = vpop.f32.mrb[0].mxu0
    %v271 = vpop.f32.mrb[0].mxu0
    %v272 = vadd.f32 0.0, %v271
    %v273 = vpop.f32.mrb[0].mxu0
    %274 = vmatprep.mubr.bf16.mxu0 0
    %275 = vmatmul.mubr.bf16.gmra.mrb[0].mxu0 %v120
    %v276 = vpop.f32.mrb[0].mxu0
    %v277 = vadd.f32 0.0, %v276
    %v278 = vpop.f32.mrb[0].mxu0
    %v279 = vpop.f32.mrb[0].mxu0
    %v280 = vadd.f32 0.0, %v279
    %v281 = vpop.f32.mrb[0].mxu0
    %282 = vdwg.mxu0
    %283 = vst [vmem:[#allocation2] sm:$0xff] %v157
    %284 = vst [vmem:[#allocation2 + $0x8] sm:$0xff] %v160
    %285 = vst [vmem:[#allocation2 + $0x10] sm:$0xff] %v165
    %286 = vst [vmem:[#allocation2 + $0x18] sm:$0xff] %v168
    %287 = vst [vmem:[#allocation2 + $0x20] sm:$0xff] %v173
    %288 = vst [vmem:[#allocation2 + $0x28] sm:$0xff] %v176
    %289 = vst [vmem:[#allocation2 + $0x30] sm:$0xff] %v181
    %290 = vst [vmem:[#allocation2 + $0x38] sm:$0xff] %v184
    %291 = vst [vmem:[#allocation2 + $0x40] sm:$0xff] %v189
    %292 = vst [vmem:[#allocation2 + $0x48] sm:$0xff] %v192
    %293 = vst [vmem:[#allocation2 + $0x50] sm:$0xff] %v197
    %294 = vst [vmem:[#allocation2 + $0x58] sm:$0xff] %v200
    %295 = vst [vmem:[#allocation2 + $0x60] sm:$0xff] %v205
    %296 = vst [vmem:[#allocation2 + $0x68] sm:$0xff] %v208
    %297 = vst [vmem:[#allocation2 + $0x70] sm:$0xff] %v213
    %298 = vst [vmem:[#allocation2 + $0x78] sm:$0xff] %v216
    %299 = vst [vmem:[#allocation2 + $0x80] sm:$0xff] %v221
    %300 = vst [vmem:[#allocation2 + $0x88] sm:$0xff] %v224
    %301 = vst [vmem:[#allocation2 + $0x90] sm:$0xff] %v229
    %302 = vst [vmem:[#allocation2 + $0x98] sm:$0xff] %v232
    %303 = vst [vmem:[#allocation2 + $0xa0] sm:$0xff] %v237
    %304 = vst [vmem:[#allocation2 + $0xa8] sm:$0xff] %v240
    %305 = vst [vmem:[#allocation2 + $0xb0] sm:$0xff] %v245
    %306 = vst [vmem:[#allocation2 + $0xb8] sm:$0xff] %v248
    %307 = vst [vmem:[#allocation2 + $0xc0] sm:$0xff] %v253
    %308 = vst [vmem:[#allocation2 + $0xc8] sm:$0xff] %v256
    %309 = vst [vmem:[#allocation2 + $0xd0] sm:$0xff] %v261
    %310 = vst [vmem:[#allocation2 + $0xd8] sm:$0xff] %v264
    %311 = vst [vmem:[#allocation2 + $0xe0] sm:$0xff] %v269
    %312 = vst [vmem:[#allocation2 + $0xe8] sm:$0xff] %v272
    %313 = vst [vmem:[#allocation2 + $0xf0] sm:$0xff] %v277
    %314 = vst [vmem:[#allocation2 + $0xf8] sm:$0xff] %v280
    // Predicated region
    $region10: #{tpu_custom_call.1} parent=1 // pred_check
      _
    $region11: #{tpu_custom_call.1} parent=1 // pred_check_branch
      %316 = sbr.rel (0) target = $region13
    $region12: #{tpu_custom_call.1} parent=1 // pred_region
      %s318 = ssub.s32 4096, 4096
      %319 = vsyncadd [#allocation3], %s318
      %s320 = sshll.u32 [#allocation2], 4
      %s321 = int_to_ptr.vmem [resolvable:$true] %s320
      %326 = dma.vmem_to_hbm [thread:$0]  %s321, 4096, %s2, [#allocation3], 128, 128, 8
    $region13: #{tpu_custom_call.1} parent=1 // pred_fallthru
      _
    // Predicated region
    $region14: #{tpu_custom_call.1} parent=1 // pred_check
      _
    $region15: #{tpu_custom_call.1} parent=1 // pred_check_branch
      %328 = sbr.rel (0) target = $region17
    $region16: #{tpu_custom_call.1} parent=1 // pred_region
      %329 = dma.done [#allocation3], 4096
    $region17: #{tpu_custom_call.1} parent=1 // pred_fallthru
      _
    %330 = vsyncpa [#allocation3], 1

</llo_original>
